<compile_context>
chip_gen: v5e
topology: v5e:2x2
jax: 0.10.0
libtpu: 0.0.40
codegen_flags: <defaults>
</compile_context>

<pallas_src>
import functools

import jax
import jax.numpy as jnp
from jax.experimental import pallas as pl
from jax.experimental.pallas import tpu as pltpu


def _round_up(x, m):
    return (x + m - 1) // m * m


# ----------------------------------------------------------------------------
# Tiled MXU matmul kernels (bf16 inputs, f32 accumulation) with fused epilogues
# ----------------------------------------------------------------------------
def _mm_kernel(a_ref, b_ref, o_ref, acc_ref):
    @pl.when(pl.program_id(2) == 0)
    def _():
        acc_ref[...] = jnp.zeros_like(acc_ref)

    acc_ref[...] += jnp.dot(a_ref[...], b_ref[...],
                            preferred_element_type=jnp.float32)

    @pl.when(pl.program_id(2) == pl.num_programs(2) - 1)
    def _():
        o_ref[...] = acc_ref[...].astype(o_ref.dtype)


def _mm_bias_kernel(a_ref, b_ref, bias_ref, o_ref, acc_ref):
    @pl.when(pl.program_id(2) == 0)
    def _():
        acc_ref[...] = jnp.zeros_like(acc_ref)

    acc_ref[...] += jnp.dot(a_ref[...], b_ref[...],
                            preferred_element_type=jnp.float32)

    @pl.when(pl.program_id(2) == pl.num_programs(2) - 1)
    def _():
        o_ref[...] = (acc_ref[...] + bias_ref[...]).astype(o_ref.dtype)


def _mm_bias_res_kernel(a_ref, b_ref, bias_ref, res_ref, o_ref, acc_ref):
    @pl.when(pl.program_id(2) == 0)
    def _():
        acc_ref[...] = jnp.zeros_like(acc_ref)

    acc_ref[...] += jnp.dot(a_ref[...], b_ref[...],
                            preferred_element_type=jnp.float32)

    @pl.when(pl.program_id(2) == pl.num_programs(2) - 1)
    def _():
        o_ref[...] = (acc_ref[...] + bias_ref[...] + res_ref[...]).astype(o_ref.dtype)


def _pick_tiles(M, K, N):
    # M tile: multiple of 8, up to 256.
    tm = min(256, _round_up(M, 8))
    Mp = _round_up(M, tm)
    # K tile: pad K to a multiple of 128 (zero contribution); single step if small.
    Kp = _round_up(K, 128)
    if Kp <= 1024:
        tk = Kp
    else:
        tk = next(c for c in (512, 384, 256, 128) if Kp % c == 0)
    # N tile: prefer 256/128-multiples with NO padding, else full-dim lane block.
    if N % 256 == 0:
        tn, Np = 256, N
    elif N % 128 == 0:
        tn, Np = 128, N
    elif N < 256:
        tn, Np = N, N               # block lane dim == full array dim (allowed)
    else:
        Np = _round_up(N, 128)
        tn = 128
    return tm, tk, tn, Mp, Kp, Np


def pallas_matmul(a, b, bias=None, residual=None):
    """out = a @ b (+ bias) (+ residual).  bf16 MXU inputs, f32 accumulation."""
    M, K = a.shape
    K2, N = b.shape
    assert K == K2
    tm, tk, tn, Mp, Kp, Np = _pick_tiles(M, K, N)
    a_p = jnp.pad(a.astype(jnp.bfloat16), ((0, Mp - M), (0, Kp - K)))
    b_p = jnp.pad(b.astype(jnp.bfloat16), ((0, Kp - K), (0, Np - N)))
    grid = (Mp // tm, Np // tn, Kp // tk)
    a_spec = pl.BlockSpec((tm, tk), lambda i, j, k: (i, k))
    b_spec = pl.BlockSpec((tk, tn), lambda i, j, k: (k, j))
    o_spec = pl.BlockSpec((tm, tn), lambda i, j, k: (i, j))
    bias_spec = pl.BlockSpec((1, tn), lambda i, j, k: (0, j))
    res_spec = pl.BlockSpec((tm, tn), lambda i, j, k: (i, j))
    cp = pltpu.CompilerParams(
        dimension_semantics=("parallel", "parallel", "arbitrary"))
    out_shape = jax.ShapeDtypeStruct((Mp, Np), jnp.float32)
    scratch = [pltpu.VMEM((tm, tn), jnp.float32)]

    if residual is not None:
        if bias is None:
            bias = jnp.zeros((N,), jnp.float32)
        bias_p = jnp.pad(bias.astype(jnp.float32), (0, Np - N)).reshape(1, Np)
        res_p = jnp.pad(residual.astype(jnp.float32), ((0, Mp - M), (0, Np - N)))
        out = pl.pallas_call(
            _mm_bias_res_kernel, out_shape=out_shape,
            grid_spec=pltpu.PrefetchScalarGridSpec(
                num_scalar_prefetch=0, grid=grid,
                in_specs=[a_spec, b_spec, bias_spec, res_spec],
                out_specs=o_spec, scratch_shapes=scratch),
            compiler_params=cp)(a_p, b_p, bias_p, res_p)
    elif bias is not None:
        bias_p = jnp.pad(bias.astype(jnp.float32), (0, Np - N)).reshape(1, Np)
        out = pl.pallas_call(
            _mm_bias_kernel, out_shape=out_shape,
            grid_spec=pltpu.PrefetchScalarGridSpec(
                num_scalar_prefetch=0, grid=grid,
                in_specs=[a_spec, b_spec, bias_spec],
                out_specs=o_spec, scratch_shapes=scratch),
            compiler_params=cp)(a_p, b_p, bias_p)
    else:
        out = pl.pallas_call(
            _mm_kernel, out_shape=out_shape,
            grid_spec=pltpu.PrefetchScalarGridSpec(
                num_scalar_prefetch=0, grid=grid,
                in_specs=[a_spec, b_spec],
                out_specs=o_spec, scratch_shapes=scratch),
            compiler_params=cp)(a_p, b_p)
    return out[:M, :N]


# ----------------------------------------------------------------------------
# BatchNorm: one-pass stats kernel + fused affine(+residual)(+LeakyReLU) kernel
# ----------------------------------------------------------------------------
def _bn_stats_kernel(x_ref, sum_ref, sq_ref):
    @pl.when(pl.program_id(0) == 0)
    def _():
        sum_ref[...] = jnp.zeros_like(sum_ref)
        sq_ref[...] = jnp.zeros_like(sq_ref)

    x = x_ref[...]
    sum_ref[...] += jnp.sum(x, axis=0, keepdims=True)
    sq_ref[...] += jnp.sum(x * x, axis=0, keepdims=True)


def _affine_kernel(x_ref, s_ref, t_ref, o_ref):
    o_ref[...] = x_ref[...] * s_ref[...] + t_ref[...]


def _affine_act_kernel(x_ref, s_ref, t_ref, o_ref):
    y = x_ref[...] * s_ref[...] + t_ref[...]
    o_ref[...] = jnp.where(y >= 0, y, 0.01 * y)


def _affine_res_act_kernel(x_ref, r_ref, s_ref, t_ref, o_ref):
    y = x_ref[...] * s_ref[...] + t_ref[...] + r_ref[...]
    o_ref[...] = jnp.where(y >= 0, y, 0.01 * y)


def _row_tile(M):
    rt = min(512, _round_up(M, 8))
    return rt, _round_up(M, rt)


def _bn_stats(x2d):
    M, C = x2d.shape
    rt, Mp = _row_tile(M)
    xp = jnp.pad(x2d, ((0, Mp - M), (0, 0)))
    s, sq = pl.pallas_call(
        _bn_stats_kernel,
        out_shape=(jax.ShapeDtypeStruct((1, C), jnp.float32),
                   jax.ShapeDtypeStruct((1, C), jnp.float32)),
        grid_spec=pltpu.PrefetchScalarGridSpec(
            num_scalar_prefetch=0, grid=(Mp // rt,),
            in_specs=[pl.BlockSpec((rt, C), lambda i: (i, 0))],
            out_specs=[pl.BlockSpec((1, C), lambda i: (0, 0)),
                       pl.BlockSpec((1, C), lambda i: (0, 0))]),
        compiler_params=pltpu.CompilerParams(
            dimension_semantics=("arbitrary",)),
    )(xp)
    mean = s[0] / M
    var = jnp.maximum(sq[0] / M - mean * mean, 0.0)   # biased var, torch train-mode
    return mean, var


def _bn_apply(x2d, scale, shift, residual2d=None, act=True):
    M, C = x2d.shape
    rt, Mp = _row_tile(M)
    xp = jnp.pad(x2d, ((0, Mp - M), (0, 0)))
    s2 = scale.reshape(1, C).astype(jnp.float32)
    t2 = shift.reshape(1, C).astype(jnp.float32)
    x_spec = pl.BlockSpec((rt, C), lambda i: (i, 0))
    v_spec = pl.BlockSpec((1, C), lambda i: (0, 0))
    out_shape = jax.ShapeDtypeStruct((Mp, C), jnp.float32)
    cp = pltpu.CompilerParams(dimension_semantics=("parallel",))
    if residual2d is not None:
        rp = jnp.pad(residual2d, ((0, Mp - M), (0, 0)))
        y = pl.pallas_call(
            _affine_res_act_kernel, out_shape=out_shape,
            grid_spec=pltpu.PrefetchScalarGridSpec(
                num_scalar_prefetch=0, grid=(Mp // rt,),
                in_specs=[x_spec, x_spec, v_spec, v_spec],
                out_specs=x_spec),
            compiler_params=cp)(xp, rp, s2, t2)
    else:
        kern = _affine_act_kernel if act else _affine_kernel
        y = pl.pallas_call(
            kern, out_shape=out_shape,
            grid_spec=pltpu.PrefetchScalarGridSpec(
                num_scalar_prefetch=0, grid=(Mp // rt,),
                in_specs=[x_spec, v_spec, v_spec],
                out_specs=x_spec),
            compiler_params=cp)(xp, s2, t2)
    return y[:M]


def batchnorm(x, bn, act, residual=None):
    """Training-mode BatchNorm2d (+residual add)(+LeakyReLU 0.01) on NHWC maps."""
    N, H, W, C = x.shape
    x2d = x.reshape(-1, C)
    mean, var = _bn_stats(x2d)
    scale = bn['gamma'] * jax.lax.rsqrt(var + 1e-5)
    shift = bn['beta'] - mean * scale
    r2d = residual.reshape(-1, C) if residual is not None else None
    y = _bn_apply(x2d, scale, shift, residual2d=r2d, act=act)
    return y.reshape(N, H, W, C)


# ----------------------------------------------------------------------------
# Convolution: channels-last im2col + MXU matmul (bias / FPN-add fused in epilogue)
# ----------------------------------------------------------------------------
# TODO(synk): move the KxK patch assembly into the conv matmul kernel (Element-offset
# shifted windows) to avoid materializing the kh*kw-expanded patches buffer in HBM.
def conv2d(x, w, b=None, stride=1, padding=0, residual=None):
    N, H, W, C = x.shape
    O, Cw, kh, kw = w.shape
    Ho = (H + 2 * padding - kh) // stride + 1
    Wo = (W + 2 * padding - kw) // stride + 1
    xb = x.astype(jnp.bfloat16)
    if kh == 1 and kw == 1 and padding == 0:
        a2d = xb[:, ::stride, ::stride, :].reshape(-1, C)
    else:
        xp = jnp.pad(xb, ((0, 0), (padding, padding), (padding, padding), (0, 0)))
        cols = []
        for i in range(kh):
            for j in range(kw):
                cols.append(xp[:, i:i + stride * Ho:stride,
                               j:j + stride * Wo:stride, :])
        patches = jnp.stack(cols, axis=-1)               # (N,Ho,Wo,C,kh*kw)
        a2d = patches.reshape(N * Ho * Wo, C * kh * kw)  # matches torch (C,kh,kw) order
    wm = w.reshape(O, C * kh * kw).T.astype(jnp.bfloat16)
    r2d = residual.reshape(N * Ho * Wo, O) if residual is not None else None
    y2d = pallas_matmul(a2d, wm, bias=b, residual=r2d)
    return y2d.reshape(N, Ho, Wo, O)


def interpolate_nearest(x, size):
    N, H, W, C = x.shape
    oh, ow = size
    hi = (jnp.arange(oh) * H) // oh
    wi = (jnp.arange(ow) * W) // ow
    return jnp.take(jnp.take(x, hi, axis=1), wi, axis=2)


# ----------------------------------------------------------------------------
# Modules (all feature maps kept NHWC)
# ----------------------------------------------------------------------------
def resblock_fwd(x, p, stride):
    out = conv2d(x, p['conv1']['w'], None, stride=stride, padding=1)
    out = batchnorm(out, p['bn1'], act=True)
    out = conv2d(out, p['conv2']['w'], None, stride=1, padding=1)
    if p['downsample'] is not None:
        identity = conv2d(x, p['downsample']['conv']['w'], None,
                          stride=stride, padding=0)
        identity = batchnorm(identity, p['downsample']['bn'], act=False)
    else:
        identity = x
    # bn2 -> += identity -> LeakyReLU, fused in one Pallas pass
    return batchnorm(out, p['bn2'], act=True, residual=identity)


def layer_fwd(x, blocks):
    for i, blk in enumerate(blocks):
        x = resblock_fwd(x, blk, stride=2 if i == 0 else 1)
    return x


def _attention_kernel(gamma_ref, q_ref, k_ref, v_ref, x_ref, o_ref, *, s_valid):
    q = q_ref[...]                                     # (1, Sp, Cq)
    k = k_ref[...]
    energy = jnp.einsum('bqd,bkd->bqk', q, k,
                        preferred_element_type=jnp.float32)
    col = jax.lax.broadcasted_iota(jnp.int32, energy.shape, 2)
    energy = jnp.where(col < s_valid, energy, -1e30)   # mask padded keys
    m = jnp.max(energy, axis=-1, keepdims=True)
    e = jnp.exp(energy - m)
    att = e / jnp.sum(e, axis=-1, keepdims=True)
    out = jnp.einsum('bqk,bkd->bqd', att, v_ref[...],
                     preferred_element_type=jnp.float32)
    o_ref[...] = gamma_ref[0, 0] * out + x_ref[...]


def self_attention(x, p):
    B, H, W, C = x.shape
    S = H * W
    Cq = p['query']['w'].shape[0]
    x2d = x.reshape(-1, C)
    # fuse q/k/v 1x1 convs into a single matmul (concatenated weights + biases)
    w_all = jnp.concatenate(
        [p['query']['w'].reshape(Cq, C),
         p['key']['w'].reshape(Cq, C),
         p['value']['w'].reshape(C, C)], axis=0).T      # (C, 2Cq + C)
    b_all = jnp.concatenate([p['query']['b'], p['key']['b'], p['value']['b']])
    qkv = pallas_matmul(x2d, w_all, bias=b_all)         # (B*S, 2Cq + C)
    q = qkv[:, :Cq].reshape(B, S, Cq)
    k = qkv[:, Cq:2 * Cq].reshape(B, S, Cq)
    v = qkv[:, 2 * Cq:].reshape(B, S, C)
    xs = x2d.reshape(B, S, C)

    Sp = _round_up(S, 8)
    pad_s = lambda a: jnp.pad(a, ((0, 0), (0, Sp - S), (0, 0)))
    qp, kp, vp, xsp = pad_s(q), pad_s(k), pad_s(v), pad_s(xs)
    gamma = jnp.reshape(p['gamma'].astype(jnp.float32), (1, 1))

    kern = functools.partial(_attention_kernel, s_valid=S)
    out = pl.pallas_call(
        kern,
        out_shape=jax.ShapeDtypeStruct((B, Sp, C), jnp.float32),
        grid_spec=pltpu.PrefetchScalarGridSpec(
            num_scalar_prefetch=0, grid=(B,),
            in_specs=[pl.BlockSpec(memory_space=pltpu.MemorySpace.SMEM),
                      pl.BlockSpec((1, Sp, Cq), lambda b: (b, 0, 0)),
                      pl.BlockSpec((1, Sp, Cq), lambda b: (b, 0, 0)),
                      pl.BlockSpec((1, Sp, C), lambda b: (b, 0, 0)),
                      pl.BlockSpec((1, Sp, C), lambda b: (b, 0, 0))],
            out_specs=pl.BlockSpec((1, Sp, C), lambda b: (b, 0, 0))),
        compiler_params=pltpu.CompilerParams(
            dimension_semantics=("parallel",)),
    )(gamma, qp, kp, vp, xsp)
    y = out[:, :S, :].reshape(B, H, W, C)
    return batchnorm(y, p['norm'], act=False)


def encoder_forward(params, x):
    # NCHW at the API boundary (matches PyTorch); compute in NHWC.
    x = jnp.transpose(x, (0, 2, 3, 1))
    x = conv2d(x, params['initial_conv']['w'], params['initial_conv']['b'],
               stride=2, padding=3)
    x = batchnorm(x, params['initial_bn'], act=True)
    x1 = layer_fwd(x, params['encoder1'])
    x2 = layer_fwd(x1, params['encoder2'])
    x3 = layer_fwd(x2, params['encoder3'])
    x4 = layer_fwd(x3, params['encoder4'])
    x5 = layer_fwd(x4, params['encoder5'])
    x5 = self_attention(x5, params['attention'])

    p5 = conv2d(x5, params['lat1']['w'], params['lat1']['b'])
    p4 = conv2d(x4, params['lat2']['w'], params['lat2']['b'],
                residual=interpolate_nearest(p5, x4.shape[1:3]))
    p3 = conv2d(x3, params['lat3']['w'], params['lat3']['b'],
                residual=interpolate_nearest(p4, x3.shape[1:3]))
    p2 = conv2d(x2, params['lat4']['w'], params['lat4']['b'],
                residual=interpolate_nearest(p3, x2.shape[1:3]))

    p5 = conv2d(p5, params['fpn1']['w'], params['fpn1']['b'], padding=1)
    p4 = conv2d(p4, params['fpn2']['w'], params['fpn2']['b'], padding=1)
    p3 = conv2d(p3, params['fpn3']['w'], params['fpn3']['b'], padding=1)
    p2 = conv2d(p2, params['fpn4']['w'], params['fpn4']['b'], padding=1)

    pooled = jnp.mean(p5, axis=(1, 2))                    # AdaptiveAvgPool2d(1)+flatten
    # tiny classifier head: plain XLA dot beats a 128-padded Pallas call
    logits = jnp.dot(pooled, params['fc']['w'].T) + params['fc']['b'][None, :]
    pyramid = [jnp.transpose(t, (0, 3, 1, 2)) for t in (p5, p4, p3, p2)]
    return logits, pyramid


# ----------------------------------------------------------------------------
# Deterministic parameter initialization (shapes follow Encoder.__init__)
# ----------------------------------------------------------------------------
class _PG:
    def __init__(self, seed):
        self._key = jax.random.PRNGKey(seed)

    def normal(self, shape, scale=0.05):
        self._key, sub = jax.random.split(self._key)
        return scale * jax.random.normal(sub, shape, dtype=jnp.float32)


def _conv_p(pg, out_c, in_c, k, bias=True):
    return {'w': pg.normal((out_c, in_c, k, k)),
            'b': pg.normal((out_c,)) if bias else None}


def _bn_p(c):
    return {'gamma': jnp.ones((c,), jnp.float32), 'beta': jnp.zeros((c,), jnp.float32)}


def _resblock_p(pg, in_c, out_c, stride):
    p = {'conv1': _conv_p(pg, out_c, in_c, 3, bias=False),
         'bn1': _bn_p(out_c),
         'conv2': _conv_p(pg, out_c, out_c, 3, bias=False),
         'bn2': _bn_p(out_c),
         'downsample': None}
    if stride != 1 or in_c != out_c:
        p['downsample'] = {'conv': _conv_p(pg, out_c, in_c, 1, bias=False),
                           'bn': _bn_p(out_c)}
    return p


def _layer_p(pg, in_c, out_c, blocks=2):
    return [_resblock_p(pg, in_c, out_c, 2)] + \
           [_resblock_p(pg, out_c, out_c, 1) for _ in range(blocks - 1)]


def init_params(output_size, seed=1234):
    pg = _PG(seed)
    cm = 64
    return {
        'initial_conv': _conv_p(pg, cm, 2, 7, bias=True),
        'initial_bn': _bn_p(cm),
        'encoder1': _layer_p(pg, cm, cm),
        'encoder2': _layer_p(pg, cm, cm * 2),
        'encoder3': _layer_p(pg, cm * 2, cm * 4),
        'encoder4': _layer_p(pg, cm * 4, cm * 8),
        'encoder5': _layer_p(pg, cm * 8, cm * 8),
        'attention': {
            'query': _conv_p(pg, (cm * 8) // 8, cm * 8, 1),
            'key': _conv_p(pg, (cm * 8) // 8, cm * 8, 1),
            'value': _conv_p(pg, cm * 8, cm * 8, 1),
            'gamma': jnp.array(0.1, jnp.float32),
            'norm': _bn_p(cm * 8),
        },
        'lat1': _conv_p(pg, 256, cm * 8, 1),
        'lat2': _conv_p(pg, 256, cm * 8, 1),
        'lat3': _conv_p(pg, 256, cm * 4, 1),
        'lat4': _conv_p(pg, 256, cm * 2, 1),
        'fpn1': _conv_p(pg, 256, 256, 3),
        'fpn2': _conv_p(pg, 256, 256, 3),
        'fpn3': _conv_p(pg, 256, 256, 3),
        'fpn4': _conv_p(pg, 256, 256, 3),
        'fc': {'w': pg.normal((output_size, 256)), 'b': pg.normal((output_size,))},
    }


# ----------------------------------------------------------------------------
if __name__ == "__main__":
    # sanity: Pallas bf16 MXU matmul vs bf16 XLA reference (awkward shapes)
    a = jax.random.normal(jax.random.PRNGKey(1), (9, 70), jnp.float32)
    b = jax.random.normal(jax.random.PRNGKey(2), (70, 33), jnp.float32)
    ref = jnp.dot(a.astype(jnp.bfloat16), b.astype(jnp.bfloat16),
                  preferred_element_type=jnp.float32)
    assert bool(jnp.allclose(pallas_matmul(a, b), ref, atol=5e-2, rtol=5e-2))

    output_size = 10
    params = init_params(output_size)
    # small but architecture-consistent input: Conv2d(2, 64, ...) expects 2 channels
    x = jax.random.normal(jax.random.PRNGKey(0), (2, 2, 64, 64), dtype=jnp.float32)

    fwd = jax.jit(encoder_forward)
    logits, pyramid = fwd(params, x)
    logits = jax.block_until_ready(logits)
    pyramid = [jax.block_until_ready(p) for p in pyramid]

    assert logits.shape == (2, output_size)
    assert pyramid[0].shape == (2, 256, 1, 1)   # p5
    assert pyramid[1].shape == (2, 256, 2, 2)   # p4
    assert pyramid[2].shape == (2, 256, 4, 4)   # p3
    assert pyramid[3].shape == (2, 256, 8, 8)   # p2
    assert bool(jnp.all(jnp.isfinite(logits)))
    print("KERNEL_OK")
</pallas_src>

<mosaic_0001>
module attributes {stable_mosaic.version = 11 : i64} {
  func.func @_mm_kernel(%arg0: i32, %arg1: i32, %arg2: i32, %arg3: memref<16x128xbf16, #tpu.memory_space<vmem>>, %arg4: memref<128x33xbf16, #tpu.memory_space<vmem>>, %arg5: memref<16x33xf32, #tpu.memory_space<vmem>>, %arg6: memref<16x33xf32, #tpu.memory_space<vmem>>) attributes {dimension_semantics = [#tpu.dimension_semantics<parallel>, #tpu.dimension_semantics<parallel>, #tpu.dimension_semantics<arbitrary>], iteration_bounds = array<i64: 1, 1, 1>, scalar_prefetch = 0 : i64, scratch_operands = 1 : i64, tpu.core_type = #tpu.core_type<tc>, window_params = [{transform_indices = @transform_0, window_bounds = array<i64: 16, 128>}, {transform_indices = @transform_1, window_bounds = array<i64: 128, 33>}, {transform_indices = @transform_2, window_bounds = array<i64: 16, 33>}]} {
    %c0_i32 = arith.constant 0 : i32
    %0 = arith.cmpi eq, %arg2, %c0_i32 : i32
    %1 = arith.extui %0 : i1 to i32
    %c0_i32_0 = arith.constant 0 : i32
    %2 = arith.cmpi ne, %1, %c0_i32_0 : i32
    scf.if %2 {
      %cst_10 = arith.constant 0.000000e+00 : f32
      %12 = vector.broadcast %cst_10 : f32 to vector<16x33xf32>
      %c0_11 = arith.constant 0 : index
      %c0_12 = arith.constant 0 : index
      %13 = vector.load %arg6[%c0_11, %c0_12] : memref<16x33xf32, #tpu.memory_space<vmem>>, vector<16x33xf32>
      tpu.vector_store %arg6[%c0_11, %c0_12], %12 {strides = array<i32>} : memref<16x33xf32, #tpu.memory_space<vmem>>, vector<16x33xf32>,
    } else {
    }
    %c0 = arith.constant 0 : index
    %c0_1 = arith.constant 0 : index
    %3 = vector.load %arg6[%c0, %c0_1] : memref<16x33xf32, #tpu.memory_space<vmem>>, vector<16x33xf32>
    %c0_2 = arith.constant 0 : index
    %c0_3 = arith.constant 0 : index
    %4 = vector.load %arg3[%c0_2, %c0_3] : memref<16x128xbf16, #tpu.memory_space<vmem>>, vector<16x128xbf16>
    %c0_4 = arith.constant 0 : index
    %c0_5 = arith.constant 0 : index
    %5 = vector.load %arg4[%c0_4, %c0_5] : memref<128x33xbf16, #tpu.memory_space<vmem>>, vector<128x33xbf16>
    %cst = arith.constant dense<0.000000e+00> : vector<16x33xf32>
    %6 = tpu.matmul %4, %5, %cst {dimension_numbers = #tpu.dot_dimension_numbers<[1], [0], [0], [1], [0, 0, 1, 1], [], []>} : vector<16x128xbf16>, vector<128x33xbf16>, vector<16x33xf32> -> vector<16x33xf32>
    %7 = arith.addf %3, %6 : vector<16x33xf32>
    %c0_6 = arith.constant 0 : index
    %c0_7 = arith.constant 0 : index
    %8 = vector.load %arg6[%c0_6, %c0_7] : memref<16x33xf32, #tpu.memory_space<vmem>>, vector<16x33xf32>
    tpu.vector_store %arg6[%c0_6, %c0_7], %7 {strides = array<i32>} : memref<16x33xf32, #tpu.memory_space<vmem>>, vector<16x33xf32>,
    %c0_i32_8 = arith.constant 0 : i32
    %9 = arith.cmpi eq, %arg2, %c0_i32_8 : i32
    %10 = arith.extui %9 : i1 to i32
    %c0_i32_9 = arith.constant 0 : i32
    %11 = arith.cmpi ne, %10, %c0_i32_9 : i32
    scf.if %11 {
      %c0_10 = arith.constant 0 : index
      %c0_11 = arith.constant 0 : index
      %12 = vector.load %arg6[%c0_10, %c0_11] : memref<16x33xf32, #tpu.memory_space<vmem>>, vector<16x33xf32>
      %c0_12 = arith.constant 0 : index
      %c0_13 = arith.constant 0 : index
      %13 = vector.load %arg5[%c0_12, %c0_13] : memref<16x33xf32, #tpu.memory_space<vmem>>, vector<16x33xf32>
      tpu.vector_store %arg5[%c0_12, %c0_13], %12 {strides = array<i32>} : memref<16x33xf32, #tpu.memory_space<vmem>>, vector<16x33xf32>,
    } else {
    }
    return
  }
  func.func @transform_0(%arg0: i32, %arg1: i32, %arg2: i32) -> (i32, i32) {
    %c0_i32 = arith.constant 0 : i32
    return %arg0, %arg2 : i32, i32
  }
  func.func @transform_1(%arg0: i32, %arg1: i32, %arg2: i32) -> (i32, i32) {
    %c0_i32 = arith.constant 0 : i32
    return %arg2, %arg1 : i32, i32
  }
  func.func @transform_2(%arg0: i32, %arg1: i32, %arg2: i32) -> (i32, i32) {
    %c0_i32 = arith.constant 0 : i32
    return %arg0, %arg1 : i32, i32
  }
}

</mosaic_0001>

<llo_original>
// kernel: tpu_custom_call.1
$region0: #{tpu_custom_call.1}
  #allocation0 [shape = 'u32[]', space=smem, size = 0x4, offset = 0x4, fixed_abs, tag = 'smem constant byte address 0x4 - core index']
  #allocation1 [shape = 'u32[72,128]{1,0:T(1,128)}', space=vmem, size = 0x9000, scoped, tag = 'internal scratch']
  #allocation2 [shape = 'f32[16,33]{1,0:T(8,128)}', space=vmem, size = 0x2000, scoped, tag = 'scratch operand']
  %s0 = inlined_call_operand.vmem [shape: bf16[16,128], index: 0, kind: input, shape index: {}]
  %s1 = inlined_call_operand.vmem [shape: bf16[128,33], index: 1, kind: input, shape index: {}]
  %s2 = inlined_call_operand.hbm [shape: f32[16,33], index: 2, kind: output, shape index: {}]
  %s3 = sld [smem:[#allocation0]]
  $region26: #{tpu_custom_call.1} parent=0
    _
  %s5 = ssub.s32 1, %s3
  %s6 = scalar_select 0, %s5, %s3
  $region1: #{tpu_custom_call.1} parent=0
    #allocation3 [shape = 'u8[8192]{0}', space=vmem, size = 0x2000, scoped, tag = 'output window, operand 0, single buffered']
    #allocation4 [shape = 's32[1]{0}', space=sflag, size = 0x4, scoped, tag = 'scoped memory for tpu_custom_call.1']
    %7 = vsyncpa [#allocation4], 0
    // Predicated region
    $region2: #{tpu_custom_call.1} parent=1 // pred_check
      _
    $region3: #{tpu_custom_call.1} parent=1 // pred_check_branch
      %9 = sbr.rel (0) target = $region5
    $region4: #{tpu_custom_call.1} parent=1 // pred_region
      _
    $region5: #{tpu_custom_call.1} parent=1 // pred_fallthru
      _
    // Predicated region
    $region6: #{tpu_custom_call.1} parent=1 // pred_check
      _
    $region7: #{tpu_custom_call.1} parent=1 // pred_check_branch
      %11 = sbr.rel (0) target = $region9
    $region8: #{tpu_custom_call.1} parent=1 // pred_region
      _
    $region9: #{tpu_custom_call.1} parent=1 // pred_fallthru
      _
    %p12 = scmp.eq.s32.totalorder 0, 0
    // Predicated region
    $region10: #{tpu_custom_call.1} parent=1 // pred_check
      %p13 = pneg %p12
    $region11: #{tpu_custom_call.1} parent=1 // pred_check_branch
      %15 = sbr.rel (%p13) target = $region13
    $region12: #{tpu_custom_call.1} parent=1 // pred_region
      %vm16 = vcmask 269312
      %17 = vst.msk [vmem:[#allocation2] sm:$0xff] %vm16, 0.0
      %18 = vst.msk [vmem:[#allocation2 + $0x8] sm:$0xff] %vm16, 0.0
    $region13: #{tpu_custom_call.1} parent=1 // pred_fallthru
      _
    %v19 = vld [vmem:[#allocation2] sm:$0xff]
    %v20 = vld [vmem:[#allocation2 + $0x8] sm:$0xff]
    %v21 = vld [vmem:[%s0] sm:$0xf]
    %v22 = vld [vmem:[%s0 + $0x4] sm:$0xf]
    %v23 = vld [vmem:[%s1] sm:$0xf]
    %v24 = vld [vmem:[%s1 + $0x4] sm:$0xf]
    %v25 = vld [vmem:[%s1 + $0x8] sm:$0xf]
    %v26 = vld [vmem:[%s1 + $0xc] sm:$0xf]
    %v27 = vld [vmem:[%s1 + $0x10] sm:$0xf]
    %v28 = vld [vmem:[%s1 + $0x14] sm:$0xf]
    %v29 = vld [vmem:[%s1 + $0x18] sm:$0xf]
    %v30 = vld [vmem:[%s1 + $0x1c] sm:$0xf]
    %v31 = vld [vmem:[%s1 + $0x20] sm:$0xf]
    %v32 = vld [vmem:[%s1 + $0x24] sm:$0xf]
    %v33 = vld [vmem:[%s1 + $0x28] sm:$0xf]
    %v34 = vld [vmem:[%s1 + $0x2c] sm:$0xf]
    %v35 = vld [vmem:[%s1 + $0x30] sm:$0xf]
    %v36 = vld [vmem:[%s1 + $0x34] sm:$0xf]
    %v37 = vld [vmem:[%s1 + $0x38] sm:$0xf]
    %v38 = vld [vmem:[%s1 + $0x3c] sm:$0xf]
    %v41 = vunpack.c.l.b16 %v21
    %v42 = vunpack.c.l.b16 %v22
    %v43 = vpack.c.b16 %v42, %v41
    %v61 = vunpack.c.l.b16 %v23
    %v62 = vunpack.c.l.b16 %v24
    %v63 = vunpack.c.l.b16 %v25
    %v64 = vunpack.c.l.b16 %v26
    %v65 = vunpack.c.l.b16 %v27
    %v66 = vunpack.c.l.b16 %v28
    %v67 = vunpack.c.l.b16 %v29
    %v68 = vunpack.c.l.b16 %v30
    %v69 = vunpack.c.l.b16 %v31
    %v70 = vunpack.c.l.b16 %v32
    %v71 = vunpack.c.l.b16 %v33
    %v72 = vunpack.c.l.b16 %v34
    %v73 = vunpack.c.l.b16 %v35
    %v74 = vunpack.c.l.b16 %v36
    %v75 = vunpack.c.l.b16 %v37
    %v76 = vunpack.c.l.b16 %v38
    %v77 = vpack.c.b16 %v62, %v61
    %v78 = vpack.c.b16 %v64, %v63
    %v79 = vpack.c.b16 %v66, %v65
    %v80 = vpack.c.b16 %v68, %v67
    %v81 = vpack.c.b16 %v70, %v69
    %v82 = vpack.c.b16 %v72, %v71
    %v83 = vpack.c.b16 %v74, %v73
    %v84 = vpack.c.b16 %v76, %v75
    %93 = vmatpush.bf16.msra.mxu0 %v84
    %94 = vmatpush.bf16.msra.mxu0 %v83
    %95 = vmatpush.bf16.msra.mxu0 %v82
    %96 = vmatpush.bf16.msra.mxu0 %v81
    %97 = vmatpush.bf16.msra.mxu0 %v80
    %98 = vmatpush.bf16.msra.mxu0 %v79
    %99 = vmatpush.bf16.msra.mxu0 %v78
    %100 = vmatpush.bf16.msra.mxu0 %v77
    %101 = vmatmul.bf16.gmra.mxu0 %v43
    %v102 = vpop.f32.mrf.mxu0
    %v103 = vadd.f32 0.0, %v102
    %v104 = vpop.f32.mrf.mxu0
    %v105 = vadd.f32 0.0, %v104
    %106 = vdwg.mxu0
    %v107 = vadd.f32 %v19, %v103
    %v108 = vadd.f32 %v20, %v105
    %vm109 = vcmask 269312
    %110 = vst.msk [vmem:[#allocation2] sm:$0xff] %vm109, %v107
    %111 = vst.msk [vmem:[#allocation2 + $0x8] sm:$0xff] %vm109, %v108
    // Predicated region
    $region14: #{tpu_custom_call.1} parent=1 // pred_check
      %p112 = pneg %p12
    $region15: #{tpu_custom_call.1} parent=1 // pred_check_branch
      %114 = sbr.rel (%p112) target = $region17
    $region16: #{tpu_custom_call.1} parent=1 // pred_region
      %v115 = vld [vmem:[#allocation2] sm:$0xff]
      %v116 = vld [vmem:[#allocation2 + $0x8] sm:$0xff]
      %117 = vst.msk [vmem:[#allocation3] sm:$0xff] %vm109, %v115
      %118 = vst.msk [vmem:[#allocation3 + $0x8] sm:$0xff] %vm109, %v116
    $region17: #{tpu_custom_call.1} parent=1 // pred_fallthru
      _
    // Predicated region
    $region18: #{tpu_custom_call.1} parent=1 // pred_check
      _
    $region19: #{tpu_custom_call.1} parent=1 // pred_check_branch
      %120 = sbr.rel (0) target = $region21
    $region20: #{tpu_custom_call.1} parent=1 // pred_region
      %122 = vsyncadd [#allocation4], 0
      %s123 = sshll.u32 [#allocation3], 4
      %s124 = int_to_ptr.vmem [resolvable:$true] %s123
      %s125 = sshll.u32 %s2, 4
      %s126 = int_to_ptr.hbm [resolvable:$true] %s125
      %131 = dma.vmem_to_hbm [thread:$0]  %s124, 256, %s126, [#allocation4], 128, 128, 8
    $region21: #{tpu_custom_call.1} parent=1 // pred_fallthru
      _
    // Predicated region
    $region22: #{tpu_custom_call.1} parent=1 // pred_check
      _
    $region23: #{tpu_custom_call.1} parent=1 // pred_check_branch
      %133 = sbr.rel (0) target = $region25
    $region24: #{tpu_custom_call.1} parent=1 // pred_region
      %135 = dma.done [#allocation4], 256
    $region25: #{tpu_custom_call.1} parent=1 // pred_fallthru
      _
    %136 = vsyncpa [#allocation4], 1

</llo_original>
